<compile_context>
chip_gen: v7x
topology: tpu7x:2x2x1
jax: 0.10.0
libtpu: 0.0.40
codegen_flags: <defaults>
</compile_context>

<pallas_src>
import functools

import jax
import jax.numpy as jnp
from jax.experimental import pallas as pl
from jax.experimental.pallas import tpu as pltpu


def _round_up(x, m):
    return (x + m - 1) // m * m


def _choose_tile(n):
    """Tile edge for the node dimension (rows of A / reduction axis)."""
    if n <= 128:
        return 128
    if n <= 512:
        return 256
    return 512


def _quantize(x, nbits):
    """QGTC.val2bit equivalent: clamp to unsigned n-bit integer range (f32 values)."""
    return jnp.clip(jnp.round(x.astype(jnp.float32)), 0.0, float(2 ** nbits - 1))


def _gcn_qnt_layer_kernel(a_ref, x_ref, w_ref, o_ref, acc_ref, *, act_bit, requant_out):
    """One quantized aggregation layer tile-step:

        acc[i] += A[i, k] @ clip(X[k] @ W, 0, 2^act_bit - 1)

    a_ref : int8  (TM, TK) tile of bit_A
    x_ref : int8  (TK, Dp) tile of bit_X (or hidden activations)
    w_ref : bf16  (Dp, Hp) full (padded) quantized weight, resident across the grid
    o_ref : (TM, Hp) output tile (int8 hidden layer / int32 output layer)
    acc_ref: f32  (TM, Hp) VMEM accumulator
    """
    k = pl.program_id(1)

    @pl.when(k == 0)
    def _init():
        acc_ref[...] = jnp.zeros_like(acc_ref)

    max_act = float(2 ** act_bit - 1)

    # bitMM2Bit(bit_X, bit_W): integer matmul on the MXU (bf16 operands are exact
    # for these tiny integers, f32 accumulation), re-quantized to act_bit.
    # Operands are integer-valued -> clip only, no rounding needed.
    xw = jnp.dot(
        x_ref[...].astype(jnp.bfloat16),
        w_ref[...].astype(jnp.bfloat16),
        preferred_element_type=jnp.float32,
    )
    xw_q = jnp.clip(xw, 0.0, max_act).astype(jnp.bfloat16)

    # bitMM2Bit / bitMM2Int (bit_A, .): aggregate over neighbors (reduction over k tiles).
    acc_ref[...] += jnp.dot(
        a_ref[...].astype(jnp.bfloat16),
        xw_q,
        preferred_element_type=jnp.float32,
    )

    @pl.when(k == pl.num_programs(1) - 1)
    def _finalize():
        res = acc_ref[...]
        if requant_out:
            # bitMM2Bit: keep hidden activations in act_bit range.
            res = jnp.clip(res, 0.0, max_act)
        # bitMM2Int (output layer): leave as full integer-valued result.
        o_ref[...] = res.astype(o_ref.dtype)


def gcn_qnt_layer(qA, qX, qW, *, act_bit, requant_out, out_dtype, tile_m, tile_k):
    """A @ requant(X @ W), tiled over rows of A (parallel) and the node reduction (arbitrary).

    qA : int8 [Np, Np]   (Np multiple of tile_m and tile_k)
    qX : int8 [Np, Dp]   (Dp multiple of 128)
    qW : bf16 [Dp, Hp]   (Hp multiple of 128)
    """
    Np = qA.shape[0]
    Dp = qX.shape[1]
    Hp = qW.shape[1]
    grid = (Np // tile_m, Np // tile_k)

    kernel = functools.partial(
        _gcn_qnt_layer_kernel, act_bit=act_bit, requant_out=requant_out
    )
    return pl.pallas_call(
        kernel,
        out_shape=jax.ShapeDtypeStruct((Np, Hp), out_dtype),
        grid_spec=pltpu.PrefetchScalarGridSpec(
            num_scalar_prefetch=0,
            grid=grid,
            in_specs=[
                pl.BlockSpec((tile_m, tile_k), lambda i, k: (i, k)),  # A tile
                pl.BlockSpec((tile_k, Dp), lambda i, k: (k, 0)),      # X tile
                pl.BlockSpec((Dp, Hp), lambda i, k: (0, 0)),          # W (resident)
            ],
            out_specs=pl.BlockSpec((tile_m, Hp), lambda i, k: (i, 0)),
            scratch_shapes=[pltpu.VMEM((tile_m, Hp), jnp.float32)],
        ),
        compiler_params=pltpu.CompilerParams(
            # row axis parallel (shards across v7x's 2 TensorCores), reduction last.
            dimension_semantics=("parallel", "arbitrary"),
            vmem_limit_bytes=32 * 1024 * 1024,
        ),
    )(qA, qX, qW)


class GCNConvQnt:
    """JAX/Pallas port of GCNConv_Qnt."""

    def __init__(self, input_dim, hidden_dim, output_dim, num_layers=2,
                 w_bit=2, act_bit=3, *, key):
        k1, k2 = jax.random.split(key)
        self.input_dim = input_dim
        self.hidden_dim = hidden_dim
        self.output_dim = output_dim
        # torch.randn(input_dim, hidden_dim) / torch.randn(hidden_dim, output_dim)
        self.W_in = jax.random.normal(k1, (input_dim, hidden_dim), jnp.float32)
        self.W_out = jax.random.normal(k2, (hidden_dim, output_dim), jnp.float32)
        self.w_bit = w_bit
        self.act_bit = act_bit
        self.bit_W_in = None
        self.bit_W_out = None

    def weight_Qnt(self):
        """Quantize weights to w_bit and pad feature dims to 128 lanes (bf16, exact)."""
        Dp = _round_up(self.input_dim, 128)
        Hp = _round_up(self.hidden_dim, 128)
        Op = _round_up(self.output_dim, 128)
        q_in = _quantize(self.W_in, self.w_bit)
        q_out = _quantize(self.W_out, self.w_bit)
        self.bit_W_in = jnp.pad(
            q_in, ((0, Dp - self.input_dim), (0, Hp - self.hidden_dim))
        ).astype(jnp.bfloat16)
        self.bit_W_out = jnp.pad(
            q_out, ((0, Hp - self.hidden_dim), (0, Op - self.output_dim))
        ).astype(jnp.bfloat16)

    def A_Qnt(self, A):
        # 1-bit adjacency, stored narrow (int8) since it is the dominant HBM stream
        # and is read by both layers.
        return jnp.clip(jnp.round(A.astype(jnp.float32)), 0.0, 1.0).astype(jnp.int8)

    def X_Qnt(self, X):
        return jnp.clip(
            jnp.round(X.astype(jnp.float32)), 0.0, float(2 ** self.act_bit - 1)
        ).astype(jnp.int8)

    def forward(self, A, X):
        N = A.shape[0]
        tile = _choose_tile(N)
        Np = _round_up(N, tile)
        Dp = _round_up(self.input_dim, 128)

        bit_A = jnp.pad(self.A_Qnt(A), ((0, Np - N), (0, Np - N)))
        bit_X = jnp.pad(self.X_Qnt(X), ((0, Np - N), (0, Dp - self.input_dim)))

        # Aggregation_Qnt(... input=True): bitMM2Bit chain -> act_bit hidden activations,
        # kept in int8 so the layer-2 HBM traffic stays narrow.
        bit_h = gcn_qnt_layer(
            bit_A, bit_X, self.bit_W_in,
            act_bit=self.act_bit, requant_out=True, out_dtype=jnp.int8,
            tile_m=tile, tile_k=tile,
        )
        # Aggregation_Qnt(... output=True): bitMM2Bit then bitMM2Int -> integer output.
        out = gcn_qnt_layer(
            bit_A, bit_h, self.bit_W_out,
            act_bit=self.act_bit, requant_out=False, out_dtype=jnp.int32,
            tile_m=tile, tile_k=tile,
        )
        return out[:N, : self.output_dim]


def _reference_forward(A, X, W_in, W_out, w_bit, act_bit):
    """Pure-JAX reference with the same quantization model, for correctness check."""
    max_act = float(2 ** act_bit - 1)
    qA = jnp.clip(jnp.round(A), 0.0, 1.0)
    qX = jnp.clip(jnp.round(X), 0.0, max_act)
    qWi = _quantize(W_in, w_bit)
    qWo = _quantize(W_out, w_bit)
    h = jnp.clip(qA @ jnp.clip(qX @ qWi, 0.0, max_act), 0.0, max_act)
    out = qA @ jnp.clip(h @ qWo, 0.0, max_act)
    return out.astype(jnp.int32)


if __name__ == "__main__":
    key = jax.random.PRNGKey(0)
    k_a, k_x, k_w = jax.random.split(key, 3)

    n_nodes, input_dim, hidden_dim, output_dim = 128, 64, 32, 16

    # Dense 0/1 adjacency for a subgraph and non-negative node embeddings.
    A = (jax.random.uniform(k_a, (n_nodes, n_nodes)) < 0.1).astype(jnp.float32)
    X = jax.random.uniform(k_x, (n_nodes, input_dim), jnp.float32) * 4.0

    model = GCNConvQnt(input_dim, hidden_dim, output_dim, w_bit=2, act_bit=3, key=k_w)
    model.weight_Qnt()

    out = model.forward(A, X)
    jax.block_until_ready(out)

    assert out.shape == (n_nodes, output_dim)
    assert out.dtype == jnp.int32

    ref = _reference_forward(A, X, model.W_in, model.W_out, model.w_bit, model.act_bit)
    assert jnp.array_equal(out, ref), "Pallas output differs from pure-JAX reference"

    print("KERNEL_OK")
</pallas_src>

<mosaic_0001>
module attributes {stable_mosaic.version = 11 : i64} {
  func.func @_gcn_qnt_layer_kernel(%arg0: i32, %arg1: i32, %arg2: memref<128x128xi8, #tpu.memory_space<vmem>>, %arg3: memref<128x128xi8, #tpu.memory_space<vmem>>, %arg4: memref<128x128xbf16, #tpu.memory_space<vmem>>, %arg5: memref<128x128xi8, #tpu.memory_space<vmem>>, %arg6: memref<128x128xf32, #tpu.memory_space<vmem>>) attributes {dimension_semantics = [#tpu.dimension_semantics<parallel>, #tpu.dimension_semantics<arbitrary>], iteration_bounds = array<i64: 1, 1>, scalar_prefetch = 0 : i64, scratch_operands = 1 : i64, tpu.core_type = #tpu.core_type<tc>, window_params = [{transform_indices = @transform_0, window_bounds = array<i64: 128, 128>}, {transform_indices = @transform_1, window_bounds = array<i64: 128, 128>}, {pipeline_mode = #tpu.pipeline_mode<synchronous>, transform_indices = @transform_2, window_bounds = array<i64: 128, 128>}, {transform_indices = @transform_3, window_bounds = array<i64: 128, 128>}]} {
    %c0_i32 = arith.constant 0 : i32
    %0 = arith.cmpi eq, %arg1, %c0_i32 : i32
    %1 = arith.extui %0 : i1 to i32
    %c0_i32_0 = arith.constant 0 : i32
    %2 = arith.cmpi ne, %1, %c0_i32_0 : i32
    scf.if %2 {
      %cst_15 = arith.constant 0.000000e+00 : f32
      %21 = vector.broadcast %cst_15 : f32 to vector<128x128xf32>
      %c0_16 = arith.constant 0 : index
      %c0_17 = arith.constant 0 : index
      %22 = vector.load %arg6[%c0_16, %c0_17] : memref<128x128xf32, #tpu.memory_space<vmem>>, vector<128x128xf32>
      tpu.vector_store %arg6[%c0_16, %c0_17], %21 {strides = array<i32>} : memref<128x128xf32, #tpu.memory_space<vmem>>, vector<128x128xf32>,
    } else {
    }
    %c0 = arith.constant 0 : index
    %c0_1 = arith.constant 0 : index
    %3 = vector.load %arg3[%c0, %c0_1] : memref<128x128xi8, #tpu.memory_space<vmem>>, vector<128x128xi8>
    %4 = arith.sitofp %3 : vector<128x128xi8> to vector<128x128xbf16>
    %c0_2 = arith.constant 0 : index
    %c0_3 = arith.constant 0 : index
    %5 = vector.load %arg4[%c0_2, %c0_3] : memref<128x128xbf16, #tpu.memory_space<vmem>>, vector<128x128xbf16>
    %cst = arith.constant dense<0.000000e+00> : vector<128x128xf32>
    %6 = tpu.matmul %4, %5, %cst {dimension_numbers = #tpu.dot_dimension_numbers<[1], [0], [0], [1], [0, 0, 1, 1], [], []>} : vector<128x128xbf16>, vector<128x128xbf16>, vector<128x128xf32> -> vector<128x128xf32>
    %cst_4 = arith.constant 0.000000e+00 : f32
    %cst_5 = arith.constant 7.000000e+00 : f32
    %7 = vector.broadcast %cst_4 : f32 to vector<128x128xf32>
    %8 = arith.maximumf %7, %6 : vector<128x128xf32>
    %9 = vector.broadcast %cst_5 : f32 to vector<128x128xf32>
    %10 = arith.minimumf %9, %8 : vector<128x128xf32>
    %11 = arith.truncf %10 : vector<128x128xf32> to vector<128x128xbf16>
    %c0_6 = arith.constant 0 : index
    %c0_7 = arith.constant 0 : index
    %12 = vector.load %arg6[%c0_6, %c0_7] : memref<128x128xf32, #tpu.memory_space<vmem>>, vector<128x128xf32>
    %c0_8 = arith.constant 0 : index
    %c0_9 = arith.constant 0 : index
    %13 = vector.load %arg2[%c0_8, %c0_9] : memref<128x128xi8, #tpu.memory_space<vmem>>, vector<128x128xi8>
    %14 = arith.sitofp %13 : vector<128x128xi8> to vector<128x128xbf16>
    %cst_10 = arith.constant dense<0.000000e+00> : vector<128x128xf32>
    %15 = tpu.matmul %14, %11, %cst_10 {dimension_numbers = #tpu.dot_dimension_numbers<[1], [0], [0], [1], [0, 0, 1, 1], [], []>} : vector<128x128xbf16>, vector<128x128xbf16>, vector<128x128xf32> -> vector<128x128xf32>
    %16 = arith.addf %12, %15 : vector<128x128xf32>
    %c0_11 = arith.constant 0 : index
    %c0_12 = arith.constant 0 : index
    %17 = vector.load %arg6[%c0_11, %c0_12] : memref<128x128xf32, #tpu.memory_space<vmem>>, vector<128x128xf32>
    tpu.vector_store %arg6[%c0_11, %c0_12], %16 {strides = array<i32>} : memref<128x128xf32, #tpu.memory_space<vmem>>, vector<128x128xf32>,
    %c0_i32_13 = arith.constant 0 : i32
    %18 = arith.cmpi eq, %arg1, %c0_i32_13 : i32
    %19 = arith.extui %18 : i1 to i32
    %c0_i32_14 = arith.constant 0 : i32
    %20 = arith.cmpi ne, %19, %c0_i32_14 : i32
    scf.if %20 {
      %c0_15 = arith.constant 0 : index
      %c0_16 = arith.constant 0 : index
      %21 = vector.load %arg6[%c0_15, %c0_16] : memref<128x128xf32, #tpu.memory_space<vmem>>, vector<128x128xf32>
      %cst_17 = arith.constant 0.000000e+00 : f32
      %cst_18 = arith.constant 7.000000e+00 : f32
      %22 = vector.broadcast %cst_17 : f32 to vector<128x128xf32>
      %23 = arith.maximumf %22, %21 : vector<128x128xf32>
      %24 = vector.broadcast %cst_18 : f32 to vector<128x128xf32>
      %25 = arith.minimumf %24, %23 : vector<128x128xf32>
      %26 = arith.fptosi %25 : vector<128x128xf32> to vector<128x128xi8>
      %c0_19 = arith.constant 0 : index
      %c0_20 = arith.constant 0 : index
      %27 = vector.load %arg5[%c0_19, %c0_20] : memref<128x128xi8, #tpu.memory_space<vmem>>, vector<128x128xi8>
      tpu.vector_store %arg5[%c0_19, %c0_20], %26 {strides = array<i32>} : memref<128x128xi8, #tpu.memory_space<vmem>>, vector<128x128xi8>,
    } else {
    }
    return
  }
  func.func @transform_0(%arg0: i32, %arg1: i32) -> (i32, i32) {
    %c0_i32 = arith.constant 0 : i32
    return %arg0, %arg1 : i32, i32
  }
  func.func @transform_1(%arg0: i32, %arg1: i32) -> (i32, i32) {
    %c0_i32 = arith.constant 0 : i32
    %c0_i32_0 = arith.constant 0 : i32
    return %arg1, %c0_i32 : i32, i32
  }
  func.func @transform_2(%arg0: i32, %arg1: i32) -> (i32, i32) {
    %c0_i32 = arith.constant 0 : i32
    %c0_i32_0 = arith.constant 0 : i32
    %c0_i32_1 = arith.constant 0 : i32
    return %c0_i32, %c0_i32_0 : i32, i32
  }
  func.func @transform_3(%arg0: i32, %arg1: i32) -> (i32, i32) {
    %c0_i32 = arith.constant 0 : i32
    %c0_i32_0 = arith.constant 0 : i32
    return %arg0, %c0_i32 : i32, i32
  }
}

</mosaic_0001>

<llo_original>
// kernel: tpu_custom_call.1
$region0: #{tpu_custom_call.1}
  #allocation0 [shape = 'u32[]', space=smem, size = 0x4, offset = 0x4, fixed_abs, tag = 'smem constant byte address 0x4 - core index']
  #allocation1 [shape = 'u32[144,128]{1,0:T(1,128)}', space=vmem, size = 0x12000, scoped, tag = 'internal scratch']
  #allocation2 [shape = 'f32[128,128]{1,0:T(8,128)}', space=vmem, size = 0x10000, scoped, tag = 'scratch operand']
  %s0 = inlined_call_operand.hbm [shape: s8[128,128], index: 0, kind: input, shape index: {}]
  %s1 = inlined_call_operand.hbm [shape: s8[128,128], index: 1, kind: input, shape index: {}]
  %s2 = inlined_call_operand.hbm [shape: bf16[128,128], index: 2, kind: input, shape index: {}]
  %s3 = inlined_call_operand.hbm [shape: s8[128,128], index: 3, kind: output, shape index: {}]
  %s4 = sld [smem:[#allocation0]]
  $region42: #{tpu_custom_call.1} parent=0
    _
  %s6 = ssub.s32 1, %s4
  %s7 = scalar_select 0, %s6, %s4
  $region1: #{tpu_custom_call.1} parent=0
    #allocation3 [shape = 'u8[16384]{0}', space=vmem, size = 0x4000, scoped, tag = 'input window, operand 0, single buffered']
    #allocation4 [shape = 's32[1]{0}', space=sflag, size = 0x4, scoped, tag = 'scoped memory for tpu_custom_call.1']
    #allocation5 [shape = 's32[1]{0}', space=sflag, size = 0x4, scoped, tag = 'scoped memory for tpu_custom_call.1']
    #allocation6 [shape = 'u8[16384]{0}', space=vmem, size = 0x4000, scoped, tag = 'input window, operand 1, single buffered']
    #allocation7 [shape = 's32[1]{0}', space=sflag, size = 0x4, scoped, tag = 'scoped memory for tpu_custom_call.1']
    #allocation8 [shape = 'u8[32768]{0}', space=vmem, size = 0x8000, scoped, tag = 'input window, operand 2, single buffered']
    #allocation9 [shape = 'u8[16384]{0}', space=vmem, size = 0x4000, scoped, tag = 'output window, operand 0, single buffered']
    %8 = vsyncpa [#allocation4], 0
    %9 = vsyncpa [#allocation7], 0
    %10 = vsyncpa [#allocation5], 0
    // Predicated region
    $region2: #{tpu_custom_call.1} parent=1 // pred_check
      _
    $region3: #{tpu_custom_call.1} parent=1 // pred_check_branch
      %12 = sbr.rel (0) target = $region5
    $region4: #{tpu_custom_call.1} parent=1 // pred_region
      %s14 = ssub.s32 512, 512
      %15 = vsyncadd [#allocation4], %s14
      %s16 = sshll.u32 [#allocation3], 4
      %s17 = int_to_ptr.vmem [resolvable:$true] %s16
      %22 = dma.hbm_to_vmem [thread:$0]  %s0, 512, %s17, [#allocation4], 128, 128, 8
    $region5: #{tpu_custom_call.1} parent=1 // pred_fallthru
      _
    // Predicated region
    $region6: #{tpu_custom_call.1} parent=1 // pred_check
      _
    $region7: #{tpu_custom_call.1} parent=1 // pred_check_branch
      %24 = sbr.rel (0) target = $region9
    $region8: #{tpu_custom_call.1} parent=1 // pred_region
      %s26 = ssub.s32 512, 512
      %27 = vsyncadd [#allocation7], %s26
      %s28 = sshll.u32 [#allocation6], 4
      %s29 = int_to_ptr.vmem [resolvable:$true] %s28
      %34 = dma.hbm_to_vmem [thread:$0]  %s1, 512, %s29, [#allocation7], 128, 128, 8
    $region9: #{tpu_custom_call.1} parent=1 // pred_fallthru
      _
    // Predicated region
    $region10: #{tpu_custom_call.1} parent=1 // pred_check
      _
    $region11: #{tpu_custom_call.1} parent=1 // pred_check_branch
      %36 = sbr.rel (0) target = $region13
    $region12: #{tpu_custom_call.1} parent=1 // pred_region
      %s38 = ssub.s32 1024, 1024
      %39 = vsyncadd [#allocation7], %s38
      %s40 = sshll.u32 [#allocation8], 4
      %s41 = int_to_ptr.vmem [resolvable:$true] %s40
      %46 = dma.hbm_to_vmem [thread:$0]  %s2, 1024, %s41, [#allocation7], 64, 64, 4
    $region13: #{tpu_custom_call.1} parent=1 // pred_fallthru
      _
    // Predicated region
    $region14: #{tpu_custom_call.1} parent=1 // pred_check
      _
    $region15: #{tpu_custom_call.1} parent=1 // pred_check_branch
      %48 = sbr.rel (0) target = $region17
    $region16: #{tpu_custom_call.1} parent=1 // pred_region
      %49 = dma.done [#allocation4], 512
    $region17: #{tpu_custom_call.1} parent=1 // pred_fallthru
      _
    // Predicated region
    $region18: #{tpu_custom_call.1} parent=1 // pred_check
      _
    $region19: #{tpu_custom_call.1} parent=1 // pred_check_branch
      %51 = sbr.rel (0) target = $region21
    $region20: #{tpu_custom_call.1} parent=1 // pred_region
      %52 = dma.done [#allocation7], 512
    $region21: #{tpu_custom_call.1} parent=1 // pred_fallthru
      _
    // Predicated region
    $region22: #{tpu_custom_call.1} parent=1 // pred_check
      _
    $region23: #{tpu_custom_call.1} parent=1 // pred_check_branch
      %54 = sbr.rel (0) target = $region25
    $region24: #{tpu_custom_call.1} parent=1 // pred_region
      %55 = dma.done [#allocation7], 1024
    $region25: #{tpu_custom_call.1} parent=1 // pred_fallthru
      _
    %p57 = scmp.eq.s32.totalorder 0, 0
    // Predicated region
    $region26: #{tpu_custom_call.1} parent=1 // pred_check
      %p58 = pneg %p57
    $region27: #{tpu_custom_call.1} parent=1 // pred_check_branch
      %60 = sbr.rel (%p58) target = $region29
    $region28: #{tpu_custom_call.1} parent=1 // pred_region
      %61 = vst [vmem:[#allocation2] sm:$0xff] 0.0
      %62 = vst [vmem:[#allocation2 + $0x8] sm:$0xff] 0.0
      %63 = vst [vmem:[#allocation2 + $0x10] sm:$0xff] 0.0
      %64 = vst [vmem:[#allocation2 + $0x18] sm:$0xff] 0.0
      %65 = vst [vmem:[#allocation2 + $0x20] sm:$0xff] 0.0
      %66 = vst [vmem:[#allocation2 + $0x28] sm:$0xff] 0.0
      %67 = vst [vmem:[#allocation2 + $0x30] sm:$0xff] 0.0
      %68 = vst [vmem:[#allocation2 + $0x38] sm:$0xff] 0.0
      %69 = vst [vmem:[#allocation2 + $0x40] sm:$0xff] 0.0
      %70 = vst [vmem:[#allocation2 + $0x48] sm:$0xff] 0.0
      %71 = vst [vmem:[#allocation2 + $0x50] sm:$0xff] 0.0
      %72 = vst [vmem:[#allocation2 + $0x58] sm:$0xff] 0.0
      %73 = vst [vmem:[#allocation2 + $0x60] sm:$0xff] 0.0
      %74 = vst [vmem:[#allocation2 + $0x68] sm:$0xff] 0.0
      %75 = vst [vmem:[#allocation2 + $0x70] sm:$0xff] 0.0
      %76 = vst [vmem:[#allocation2 + $0x78] sm:$0xff] 0.0
    $region29: #{tpu_custom_call.1} parent=1 // pred_fallthru
      _
    %v77 = vld [vmem:[#allocation6] sm:$0xff]
    %v78 = vld [vmem:[#allocation6 + $0x8] sm:$0xff]
    %v79 = vld [vmem:[#allocation6 + $0x10] sm:$0xff]
    %v80 = vld [vmem:[#allocation6 + $0x18] sm:$0xff]
    %v81 = vunpack.c.l.s8.bf16 %v77
    %v82 = vunpack.c.h.s8.bf16 %v77
    %v83 = vunpack.c.l.s8.bf16 %v78
    %v84 = vunpack.c.h.s8.bf16 %v78
    %v85 = vunpack.c.l.s8.bf16 %v79
    %v86 = vunpack.c.h.s8.bf16 %v79
    %v87 = vunpack.c.l.s8.bf16 %v80
    %v88 = vunpack.c.h.s8.bf16 %v80
    %v89 = vld [vmem:[#allocation8] sm:$0xf]
    %v90 = vld [vmem:[#allocation8 + $0x4] sm:$0xf]
    %v91 = vld [vmem:[#allocation8 + $0x8] sm:$0xf]
    %v92 = vld [vmem:[#allocation8 + $0xc] sm:$0xf]
    %v93 = vld [vmem:[#allocation8 + $0x10] sm:$0xf]
    %v94 = vld [vmem:[#allocation8 + $0x14] sm:$0xf]
    %v95 = vld [vmem:[#allocation8 + $0x18] sm:$0xf]
    %v96 = vld [vmem:[#allocation8 + $0x1c] sm:$0xf]
    %v97 = vld [vmem:[#allocation8 + $0x20] sm:$0xf]
    %v98 = vld [vmem:[#allocation8 + $0x24] sm:$0xf]
    %v99 = vld [vmem:[#allocation8 + $0x28] sm:$0xf]
    %v100 = vld [vmem:[#allocation8 + $0x2c] sm:$0xf]
    %v101 = vld [vmem:[#allocation8 + $0x30] sm:$0xf]
    %v102 = vld [vmem:[#allocation8 + $0x34] sm:$0xf]
    %v103 = vld [vmem:[#allocation8 + $0x38] sm:$0xf]
    %v104 = vld [vmem:[#allocation8 + $0x3c] sm:$0xf]
    %v121 = vunpack.c.l.b16 %v89
    %v122 = vunpack.c.l.b16 %v90
    %v123 = vunpack.c.l.b16 %v91
    %v124 = vunpack.c.l.b16 %v92
    %v125 = vunpack.c.l.b16 %v93
    %v126 = vunpack.c.l.b16 %v94
    %v127 = vunpack.c.l.b16 %v95
    %v128 = vunpack.c.l.b16 %v96
    %v129 = vunpack.c.l.b16 %v97
    %v130 = vunpack.c.l.b16 %v98
    %v131 = vunpack.c.l.b16 %v99
    %v132 = vunpack.c.l.b16 %v100
    %v133 = vunpack.c.l.b16 %v101
    %v134 = vunpack.c.l.b16 %v102
    %v135 = vunpack.c.l.b16 %v103
    %v136 = vunpack.c.l.b16 %v104
    %v137 = vpack.c.b16 %v122, %v121
    %v138 = vpack.c.b16 %v124, %v123
    %v139 = vpack.c.b16 %v126, %v125
    %v140 = vpack.c.b16 %v128, %v127
    %v141 = vpack.c.b16 %v130, %v129
    %v142 = vpack.c.b16 %v132, %v131
    %v143 = vpack.c.b16 %v134, %v133
    %v144 = vpack.c.b16 %v136, %v135
    %153 = vmatprep.subr.bf16.mxu0 0
    %154 = vmatpush1.bf16.msra.mxu0 %v137
    %155 = vmatprep.subr.bf16.mxu0 0
    %156 = vmatpush1.bf16.msra.mxu0 %v138
    %157 = vmatprep.subr.bf16.mxu0 0
    %158 = vmatpush1.bf16.msra.mxu0 %v139
    %159 = vmatprep.subr.bf16.mxu0 0
    %160 = vmatpush1.bf16.msra.mxu0 %v140
    %161 = vmatprep.subr.bf16.mxu0 0
    %162 = vmatpush1.bf16.msra.mxu0 %v141
    %163 = vmatprep.subr.bf16.mxu0 0
    %164 = vmatpush1.bf16.msra.mxu0 %v142
    %165 = vmatprep.subr.bf16.mxu0 0
    %166 = vmatpush1.bf16.msra.mxu0 %v143
    %167 = vmatprep.subr.bf16.mxu0 0
    %168 = vmatpush1.bf16.msra.mxu0 %v144
    %169 = vmatprep.subr.bf16.mxu0 0
    %170 = vmatpush1.bf16.msra.mxu0 0
    %171 = vmatprep.subr.bf16.mxu0 0
    %172 = vmatpush1.bf16.msra.mxu0 0
    %173 = vmatprep.subr.bf16.mxu0 0
    %174 = vmatpush1.bf16.msra.mxu0 0
    %175 = vmatprep.subr.bf16.mxu0 0
    %176 = vmatpush1.bf16.msra.mxu0 0
    %177 = vmatprep.subr.bf16.mxu0 0
    %178 = vmatpush1.bf16.msra.mxu0 0
    %179 = vmatprep.subr.bf16.mxu0 0
    %180 = vmatpush1.bf16.msra.mxu0 0
    %181 = vmatprep.subr.bf16.mxu0 0
    %182 = vmatpush1.bf16.msra.mxu0 0
    %183 = vmatprep.subr.bf16.mxu0 0
    %184 = vmatpush1.bf16.msra.mxu0 0
    %185 = vmatprep.mubr.bf16.mxu0 0
    %186 = vmatmul.mubr.bf16.gmra.mrb[0].mxu0 %v81
    %v187 = vpop.f32.mrb[0].mxu0
    %v188 = vadd.f32 0.0, %v187
    %v189 = vpop.f32.mrb[0].mxu0
    %v190 = vpop.f32.mrb[0].mxu0
    %v191 = vadd.f32 0.0, %v190
    %v192 = vpop.f32.mrb[0].mxu0
    %193 = vmatprep.mubr.bf16.mxu0 0
    %194 = vmatmul.mubr.bf16.gmra.mrb[0].mxu0 %v82
    %v195 = vpop.f32.mrb[0].mxu0
    %v196 = vadd.f32 0.0, %v195
    %v197 = vpop.f32.mrb[0].mxu0
    %v198 = vpop.f32.mrb[0].mxu0
    %v199 = vadd.f32 0.0, %v198
    %v200 = vpop.f32.mrb[0].mxu0
    %201 = vmatprep.mubr.bf16.mxu0 0
    %202 = vmatmul.mubr.bf16.gmra.mrb[0].mxu0 %v83
    %v203 = vpop.f32.mrb[0].mxu0
    %v204 = vadd.f32 0.0, %v203
    %v205 = vpop.f32.mrb[0].mxu0
    %v206 = vpop.f32.mrb[0].mxu0
    %v207 = vadd.f32 0.0, %v206
    %v208 = vpop.f32.mrb[0].mxu0
    %209 = vmatprep.mubr.bf16.mxu0 0
    %210 = vmatmul.mubr.bf16.gmra.mrb[0].mxu0 %v84
    %v211 = vpop.f32.mrb[0].mxu0
    %v212 = vadd.f32 0.0, %v211
    %v213 = vpop.f32.mrb[0].mxu0
    %v214 = vpop.f32.mrb[0].mxu0
    %v215 = vadd.f32 0.0, %v214
    %v216 = vpop.f32.mrb[0].mxu0
    %217 = vmatprep.mubr.bf16.mxu0 0
    %218 = vmatmul.mubr.bf16.gmra.mrb[0].mxu0 %v85
    %v219 = vpop.f32.mrb[0].mxu0
    %v220 = vadd.f32 0.0, %v219
    %v221 = vpop.f32.mrb[0].mxu0
    %v222 = vpop.f32.mrb[0].mxu0
    %v223 = vadd.f32 0.0, %v222
    %v224 = vpop.f32.mrb[0].mxu0
    %225 = vmatprep.mubr.bf16.mxu0 0
    %226 = vmatmul.mubr.bf16.gmra.mrb[0].mxu0 %v86
    %v227 = vpop.f32.mrb[0].mxu0
    %v228 = vadd.f32 0.0, %v227
    %v229 = vpop.f32.mrb[0].mxu0
    %v230 = vpop.f32.mrb[0].mxu0
    %v231 = vadd.f32 0.0, %v230
    %v232 = vpop.f32.mrb[0].mxu0
    %233 = vmatprep.mubr.bf16.mxu0 0
    %234 = vmatmul.mubr.bf16.gmra.mrb[0].mxu0 %v87
    %v235 = vpop.f32.mrb[0].mxu0
    %v236 = vadd.f32 0.0, %v235
    %v237 = vpop.f32.mrb[0].mxu0
    %v238 = vpop.f32.mrb[0].mxu0
    %v239 = vadd.f32 0.0, %v238
    %v240 = vpop.f32.mrb[0].mxu0
    %241 = vmatprep.mubr.bf16.mxu0 0
    %242 = vmatmul.mubr.bf16.gmra.mrb[0].mxu0 %v88
    %v243 = vpop.f32.mrb[0].mxu0
    %v244 = vadd.f32 0.0, %v243
    %v245 = vpop.f32.mrb[0].mxu0
    %v246 = vpop.f32.mrb[0].mxu0
    %v247 = vadd.f32 0.0, %v246
    %v248 = vpop.f32.mrb[0].mxu0
    %249 = vdwg.mxu0
    %v250 = vmax.f32 %v188, 0.0
    %v251 = vmax.f32 %v191, 0.0
    %v252 = vmax.f32 %v196, 0.0
    %v253 = vmax.f32 %v199, 0.0
    %v254 = vmax.f32 %v204, 0.0
    %v255 = vmax.f32 %v207, 0.0
    %v256 = vmax.f32 %v212, 0.0
    %v257 = vmax.f32 %v215, 0.0
    %v258 = vmax.f32 %v220, 0.0
    %v259 = vmax.f32 %v223, 0.0
    %v260 = vmax.f32 %v228, 0.0
    %v261 = vmax.f32 %v231, 0.0
    %v262 = vmax.f32 %v236, 0.0
    %v263 = vmax.f32 %v239, 0.0
    %v264 = vmax.f32 %v244, 0.0
    %v265 = vmax.f32 %v247, 0.0
    %v266 = vmin.f32 %v250, 7.0
    %v267 = vmin.f32 %v251, 7.0
    %v268 = vmin.f32 %v252, 7.0
    %v269 = vmin.f32 %v253, 7.0
    %v270 = vmin.f32 %v254, 7.0
    %v271 = vmin.f32 %v255, 7.0
    %v272 = vmin.f32 %v256, 7.0
    %v273 = vmin.f32 %v257, 7.0
    %v274 = vmin.f32 %v258, 7.0
    %v275 = vmin.f32 %v259, 7.0
    %v276 = vmin.f32 %v260, 7.0
    %v277 = vmin.f32 %v261, 7.0
    %v278 = vmin.f32 %v262, 7.0
    %v279 = vmin.f32 %v263, 7.0
    %v280 = vmin.f32 %v264, 7.0
    %v281 = vmin.f32 %v265, 7.0
    %v282 = vpack.c.bf16 %v267, %v266
    %v283 = vpack.c.bf16 %v269, %v268
    %v284 = vpack.c.bf16 %v271, %v270
    %v285 = vpack.c.bf16 %v273, %v272
    %v286 = vpack.c.bf16 %v275, %v274
    %v287 = vpack.c.bf16 %v277, %v276
    %v288 = vpack.c.bf16 %v279, %v278
    %v289 = vpack.c.bf16 %v281, %v280
    %v290 = vld [vmem:[#allocation2] sm:$0xff]
    %v291 = vld [vmem:[#allocation2 + $0x8] sm:$0xff]
    %v292 = vld [vmem:[#allocation2 + $0x10] sm:$0xff]
    %v293 = vld [vmem:[#allocation2 + $0x18] sm:$0xff]
    %v294 = vld [vmem:[#allocation2 + $0x20] sm:$0xff]
    %v295 = vld [vmem:[#allocation2 + $0x28] sm:$0xff]
    %v296 = vld [vmem:[#allocation2 + $0x30] sm:$0xff]
    %v297 = vld [vmem:[#allocation2 + $0x38] sm:$0xff]
    %v298 = vld [vmem:[#allocation2 + $0x40] sm:$0xff]
    %v299 = vld [vmem:[#allocation2 + $0x48] sm:$0xff]
    %v300 = vld [vmem:[#allocation2 + $0x50] sm:$0xff]
    %v301 = vld [vmem:[#allocation2 + $0x58] sm:$0xff]
    %v302 = vld [vmem:[#allocation2 + $0x60] sm:$0xff]
    %v303 = vld [vmem:[#allocation2 + $0x68] sm:$0xff]
    %v304 = vld [vmem:[#allocation2 + $0x70] sm:$0xff]
    %v305 = vld [vmem:[#allocation2 + $0x78] sm:$0xff]
    %v306 = vld [vmem:[#allocation3] sm:$0xff]
    %v307 = vld [vmem:[#allocation3 + $0x8] sm:$0xff]
    %v308 = vld [vmem:[#allocation3 + $0x10] sm:$0xff]
    %v309 = vld [vmem:[#allocation3 + $0x18] sm:$0xff]
    %v310 = vunpack.c.l.s8.bf16 %v306
    %v311 = vunpack.c.h.s8.bf16 %v306
    %v312 = vunpack.c.l.s8.bf16 %v307
    %v313 = vunpack.c.h.s8.bf16 %v307
    %v314 = vunpack.c.l.s8.bf16 %v308
    %v315 = vunpack.c.h.s8.bf16 %v308
    %v316 = vunpack.c.l.s8.bf16 %v309
    %v317 = vunpack.c.h.s8.bf16 %v309
    %318 = vmatprep.subr.bf16.mxu0 0
    %319 = vmatpush1.bf16.msra.mxu0 %v282
    %320 = vmatprep.subr.bf16.mxu0 0
    %321 = vmatpush1.bf16.msra.mxu0 %v283
    %322 = vmatprep.subr.bf16.mxu0 0
    %323 = vmatpush1.bf16.msra.mxu0 %v284
    %324 = vmatprep.subr.bf16.mxu0 0
    %325 = vmatpush1.bf16.msra.mxu0 %v285
    %326 = vmatprep.subr.bf16.mxu0 0
    %327 = vmatpush1.bf16.msra.mxu0 %v286
    %328 = vmatprep.subr.bf16.mxu0 0
    %329 = vmatpush1.bf16.msra.mxu0 %v287
    %330 = vmatprep.subr.bf16.mxu0 0
    %331 = vmatpush1.bf16.msra.mxu0 %v288
    %332 = vmatprep.subr.bf16.mxu0 0
    %333 = vmatpush1.bf16.msra.mxu0 %v289
    %334 = vmatprep.subr.bf16.mxu0 0
    %335 = vmatpush1.bf16.msra.mxu0 0
    %336 = vmatprep.subr.bf16.mxu0 0
    %337 = vmatpush1.bf16.msra.mxu0 0
    %338 = vmatprep.subr.bf16.mxu0 0
    %339 = vmatpush1.bf16.msra.mxu0 0
    %340 = vmatprep.subr.bf16.mxu0 0
    %341 = vmatpush1.bf16.msra.mxu0 0
    %342 = vmatprep.subr.bf16.mxu0 0
    %343 = vmatpush1.bf16.msra.mxu0 0
    %344 = vmatprep.subr.bf16.mxu0 0
    %345 = vmatpush1.bf16.msra.mxu0 0
    %346 = vmatprep.subr.bf16.mxu0 0
    %347 = vmatpush1.bf16.msra.mxu0 0
    %348 = vmatprep.subr.bf16.mxu0 0
    %349 = vmatpush1.bf16.msra.mxu0 0
    %350 = vmatprep.mubr.bf16.mxu0 0
    %351 = vmatmul.mubr.bf16.gmra.mrb[0].mxu0 %v310
    %v352 = vpop.f32.mrb[0].mxu0
    %v353 = vadd.f32 0.0, %v352
    %v354 = vpop.f32.mrb[0].mxu0
    %v355 = vpop.f32.mrb[0].mxu0
    %v356 = vadd.f32 0.0, %v355
    %v357 = vpop.f32.mrb[0].mxu0
    %358 = vmatprep.mubr.bf16.mxu0 0
    %359 = vmatmul.mubr.bf16.gmra.mrb[0].mxu0 %v311
    %v360 = vpop.f32.mrb[0].mxu0
    %v361 = vadd.f32 0.0, %v360
    %v362 = vpop.f32.mrb[0].mxu0
    %v363 = vpop.f32.mrb[0].mxu0
    %v364 = vadd.f32 0.0, %v363
    %v365 = vpop.f32.mrb[0].mxu0
    %366 = vmatprep.mubr.bf16.mxu0 0
    %367 = vmatmul.mubr.bf16.gmra.mrb[0].mxu0 %v312
    %v368 = vpop.f32.mrb[0].mxu0
    %v369 = vadd.f32 0.0, %v368
    %v370 = vpop.f32.mrb[0].mxu0
    %v371 = vpop.f32.mrb[0].mxu0
    %v372 = vadd.f32 0.0, %v371
    %v373 = vpop.f32.mrb[0].mxu0
    %374 = vmatprep.mubr.bf16.mxu0 0
    %375 = vmatmul.mubr.bf16.gmra.mrb[0].mxu0 %v313
    %v376 = vpop.f32.mrb[0].mxu0
    %v377 = vadd.f32 0.0, %v376
    %v378 = vpop.f32.mrb[0].mxu0
    %v379 = vpop.f32.mrb[0].mxu0
    %v380 = vadd.f32 0.0, %v379
    %v381 = vpop.f32.mrb[0].mxu0
    %382 = vmatprep.mubr.bf16.mxu0 0
    %383 = vmatmul.mubr.bf16.gmra.mrb[0].mxu0 %v314
    %v384 = vpop.f32.mrb[0].mxu0
    %v385 = vadd.f32 0.0, %v384
    %v386 = vpop.f32.mrb[0].mxu0
    %v387 = vpop.f32.mrb[0].mxu0
    %v388 = vadd.f32 0.0, %v387
    %v389 = vpop.f32.mrb[0].mxu0
    %390 = vmatprep.mubr.bf16.mxu0 0
    %391 = vmatmul.mubr.bf16.gmra.mrb[0].mxu0 %v315
    %v392 = vpop.f32.mrb[0].mxu0
    %v393 = vadd.f32 0.0, %v392
    %v394 = vpop.f32.mrb[0].mxu0
    %v395 = vpop.f32.mrb[0].mxu0
    %v396 = vadd.f32 0.0, %v395
    %v397 = vpop.f32.mrb[0].mxu0
    %398 = vmatprep.mubr.bf16.mxu0 0
    %399 = vmatmul.mubr.bf16.gmra.mrb[0].mxu0 %v316
    %v400 = vpop.f32.mrb[0].mxu0
    %v401 = vadd.f32 0.0, %v400
    %v402 = vpop.f32.mrb[0].mxu0
    %v403 = vpop.f32.mrb[0].mxu0
    %v404 = vadd.f32 0.0, %v403
    %v405 = vpop.f32.mrb[0].mxu0
    %406 = vmatprep.mubr.bf16.mxu0 0
    %407 = vmatmul.mubr.bf16.gmra.mrb[0].mxu0 %v317
    %v408 = vpop.f32.mrb[0].mxu0
    %v409 = vadd.f32 0.0, %v408
    %v410 = vpop.f32.mrb[0].mxu0
    %v411 = vpop.f32.mrb[0].mxu0
    %v412 = vadd.f32 0.0, %v411
    %v413 = vpop.f32.mrb[0].mxu0
    %414 = vdwg.mxu0
    %v415 = vadd.f32 %v290, %v353
    %v416 = vadd.f32 %v291, %v356
    %v417 = vadd.f32 %v292, %v361
    %v418 = vadd.f32 %v293, %v364
    %v419 = vadd.f32 %v294, %v369
    %v420 = vadd.f32 %v295, %v372
    %v421 = vadd.f32 %v296, %v377
    %v422 = vadd.f32 %v297, %v380
    %v423 = vadd.f32 %v298, %v385
    %v424 = vadd.f32 %v299, %v388
    %v425 = vadd.f32 %v300, %v393
    %v426 = vadd.f32 %v301, %v396
    %v427 = vadd.f32 %v302, %v401
    %v428 = vadd.f32 %v303, %v404
    %v429 = vadd.f32 %v304, %v409
    %v430 = vadd.f32 %v305, %v412
    %431 = vst [vmem:[#allocation2] sm:$0xff] %v415
    %432 = vst [vmem:[#allocation2 + $0x8] sm:$0xff] %v416
    %433 = vst [vmem:[#allocation2 + $0x10] sm:$0xff] %v417
    %434 = vst [vmem:[#allocation2 + $0x18] sm:$0xff] %v418
    %435 = vst [vmem:[#allocation2 + $0x20] sm:$0xff] %v419
    %436 = vst [vmem:[#allocation2 + $0x28] sm:$0xff] %v420
    %437 = vst [vmem:[#allocation2 + $0x30] sm:$0xff] %v421
    %438 = vst [vmem:[#allocation2 + $0x38] sm:$0xff] %v422
    %439 = vst [vmem:[#allocation2 + $0x40] sm:$0xff] %v423
    %440 = vst [vmem:[#allocation2 + $0x48] sm:$0xff] %v424
    %441 = vst [vmem:[#allocation2 + $0x50] sm:$0xff] %v425
    %442 = vst [vmem:[#allocation2 + $0x58] sm:$0xff] %v426
    %443 = vst [vmem:[#allocation2 + $0x60] sm:$0xff] %v427
    %444 = vst [vmem:[#allocation2 + $0x68] sm:$0xff] %v428
    %445 = vst [vmem:[#allocation2 + $0x70] sm:$0xff] %v429
    %446 = vst [vmem:[#allocation2 + $0x78] sm:$0xff] %v430
    // Predicated region
    $region30: #{tpu_custom_call.1} parent=1 // pred_check
      %p447 = pneg %p57
    $region31: #{tpu_custom_call.1} parent=1 // pred_check_branch
      %449 = sbr.rel (%p447) target = $region33
    $region32: #{tpu_custom_call.1} parent=1 // pred_region
      %v450 = vld [vmem:[#allocation2] sm:$0xff]
      %v451 = vld [vmem:[#allocation2 + $0x8] sm:$0xff]
      %v452 = vld [vmem:[#allocation2 + $0x10] sm:$0xff]
      %v453 = vld [vmem:[#allocation2 + $0x18] sm:$0xff]
      %v454 = vld [vmem:[#allocation2 + $0x20] sm:$0xff]
      %v455 = vld [vmem:[#allocation2 + $0x28] sm:$0xff]
      %v456 = vld [vmem:[#allocation2 + $0x30] sm:$0xff]
      %v457 = vld [vmem:[#allocation2 + $0x38] sm:$0xff]
      %v458 = vld [vmem:[#allocation2 + $0x40] sm:$0xff]
      %v459 = vld [vmem:[#allocation2 + $0x48] sm:$0xff]
      %v460 = vld [vmem:[#allocation2 + $0x50] sm:$0xff]
      %v461 = vld [vmem:[#allocation2 + $0x58] sm:$0xff]
      %v462 = vld [vmem:[#allocation2 + $0x60] sm:$0xff]
      %v463 = vld [vmem:[#allocation2 + $0x68] sm:$0xff]
      %v464 = vld [vmem:[#allocation2 + $0x70] sm:$0xff]
      %v465 = vld [vmem:[#allocation2 + $0x78] sm:$0xff]
      %v466 = vmax.f32 %v450, 0.0
      %v467 = vmax.f32 %v451, 0.0
      %v468 = vmax.f32 %v452, 0.0
      %v469 = vmax.f32 %v453, 0.0
      %v470 = vmax.f32 %v454, 0.0
      %v471 = vmax.f32 %v455, 0.0
      %v472 = vmax.f32 %v456, 0.0
      %v473 = vmax.f32 %v457, 0.0
      %v474 = vmax.f32 %v458, 0.0
      %v475 = vmax.f32 %v459, 0.0
      %v476 = vmax.f32 %v460, 0.0
      %v477 = vmax.f32 %v461, 0.0
      %v478 = vmax.f32 %v462, 0.0
      %v479 = vmax.f32 %v463, 0.0
      %v480 = vmax.f32 %v464, 0.0
      %v481 = vmax.f32 %v465, 0.0
      %v482 = vmin.f32 %v466, 7.0
      %v483 = vmin.f32 %v467, 7.0
      %v484 = vmin.f32 %v468, 7.0
      %v485 = vmin.f32 %v469, 7.0
      %v486 = vmin.f32 %v470, 7.0
      %v487 = vmin.f32 %v471, 7.0
      %v488 = vmin.f32 %v472, 7.0
      %v489 = vmin.f32 %v473, 7.0
      %v490 = vmin.f32 %v474, 7.0
      %v491 = vmin.f32 %v475, 7.0
      %v492 = vmin.f32 %v476, 7.0
      %v493 = vmin.f32 %v477, 7.0
      %v494 = vmin.f32 %v478, 7.0
      %v495 = vmin.f32 %v479, 7.0
      %v496 = vmin.f32 %v480, 7.0
      %v497 = vmin.f32 %v481, 7.0
      %v498 = vtrunc.f32 %v482
      %v499 = vtrunc.f32 %v483
      %v500 = vtrunc.f32 %v484
      %v501 = vtrunc.f32 %v485
      %v502 = vtrunc.f32 %v486
      %v503 = vtrunc.f32 %v487
      %v504 = vtrunc.f32 %v488
      %v505 = vtrunc.f32 %v489
      %v506 = vtrunc.f32 %v490
      %v507 = vtrunc.f32 %v491
      %v508 = vtrunc.f32 %v492
      %v509 = vtrunc.f32 %v493
      %v510 = vtrunc.f32 %v494
      %v511 = vtrunc.f32 %v495
      %v512 = vtrunc.f32 %v496
      %v513 = vtrunc.f32 %v497
      %v514 = vpack.c.f32.eXmY %v498, %v499, 312
      %v518 = vpack.c.f32.eXmY %v500, %v501, 312
      %v522 = vpack.c.b8 %v518, %v514
      %v524 = vpack.c.f32.eXmY %v502, %v503, 312
      %v528 = vpack.c.f32.eXmY %v504, %v505, 312
      %v532 = vpack.c.b8 %v528, %v524
      %v534 = vpack.c.f32.eXmY %v506, %v507, 312
      %v538 = vpack.c.f32.eXmY %v508, %v509, 312
      %v542 = vpack.c.b8 %v538, %v534
      %v544 = vpack.c.f32.eXmY %v510, %v511, 312
      %v548 = vpack.c.f32.eXmY %v512, %v513, 312
      %v552 = vpack.c.b8 %v548, %v544
      %554 = vst [vmem:[#allocation9] sm:$0xff] %v522
      %555 = vst [vmem:[#allocation9 + $0x8] sm:$0xff] %v532
      %556 = vst [vmem:[#allocation9 + $0x10] sm:$0xff] %v542
      %557 = vst [vmem:[#allocation9 + $0x18] sm:$0xff] %v552
    $region33: #{tpu_custom_call.1} parent=1 // pred_fallthru
      _
    // Predicated region
    $region34: #{tpu_custom_call.1} parent=1 // pred_check
      _
    $region35: #{tpu_custom_call.1} parent=1 // pred_check_branch
      %559 = sbr.rel (0) target = $region37
    $region36: #{tpu_custom_call.1} parent=1 // pred_region
      %s561 = ssub.s32 512, 512
      %562 = vsyncadd [#allocation5], %s561
      %s563 = sshll.u32 [#allocation9], 4
      %s564 = int_to_ptr.vmem [resolvable:$true] %s563
      %569 = dma.vmem_to_hbm [thread:$0]  %s564, 512, %s3, [#allocation5], 128, 128, 8
    $region37: #{tpu_custom_call.1} parent=1 // pred_fallthru
      _
    // Predicated region
    $region38: #{tpu_custom_call.1} parent=1 // pred_check
      _
    $region39: #{tpu_custom_call.1} parent=1 // pred_check_branch
      %571 = sbr.rel (0) target = $region41
    $region40: #{tpu_custom_call.1} parent=1 // pred_region
      %572 = dma.done [#allocation5], 512
    $region41: #{tpu_custom_call.1} parent=1 // pred_fallthru
      _
    %573 = vsyncpa [#allocation4], 1
    %574 = vsyncpa [#allocation7], 1
    %575 = vsyncpa [#allocation5], 1

</llo_original>
